<compile_context>
chip_gen: v6e
topology: v6e:2x2x1
jax: 0.10.0
libtpu: 0.0.40
codegen_flags: <defaults>
</compile_context>

<pallas_src>
import jax
import jax.numpy as jnp
from jax.experimental import pallas as pl
from jax.experimental.pallas import tpu as pltpu

_SUBLANE = 8        # second-to-last dim granularity (f32)
_MAX_TILE_B = 2048  # max batch rows per grid step (review: 1024-2048)


def _round_up(n, m):
    return ((n + m - 1) // m) * m


def _cdiv(a, b):
    return (a + b - 1) // b


def _decoder_kernel(x_ref, w1_ref, b1_ref, w2_ref, b2_ref, o_ref):
    # First Linear + ReLU (MXU matmul, f32 accumulate; epilogue in f32).
    h = jnp.dot(x_ref[...], w1_ref[...], preferred_element_type=jnp.float32)
    h = jnp.maximum(h + b1_ref[...].astype(jnp.float32), 0.0)
    # Second Linear + Sigmoid.  astype is a no-op for f32 weights; it keeps the
    # MXU input dtype matched if weights are later stored in bf16.
    z = jnp.dot(h.astype(w2_ref.dtype), w2_ref[...],
                preferred_element_type=jnp.float32)
    z = z + b2_ref[...].astype(jnp.float32)
    o_ref[...] = jax.nn.sigmoid(z).astype(o_ref.dtype)


@jax.jit
def _decoder_forward_impl(x, w1, b1, w2, b2):
    batch, latent = x.shape
    hidden = w1.shape[1]
    output = w2.shape[1]

    # Defensive bias shape (accepts (F,) or (1, F)).
    b1 = b1.reshape(1, hidden)
    b2 = b2.reshape(1, output)

    # ---- balanced batch tiling (only padding in the whole path) -------------
    num_tiles = max(1, _cdiv(batch, _MAX_TILE_B))
    tile_b = _round_up(_cdiv(batch, num_tiles), _SUBLANE)
    batch_p = num_tiles * tile_b

    xp = x if batch_p == batch else jnp.pad(x, ((0, batch_p - batch), (0, 0)))

    # ---- advisory cost estimate for the XLA scheduler ------------------------
    flops = (2 * batch_p * (latent * hidden + hidden * output)
             + batch_p * (2 * hidden + output))
    bytes_accessed = (
        batch_p * latent * x.dtype.itemsize
        + w1.size * w1.dtype.itemsize + b1.size * b1.dtype.itemsize
        + w2.size * w2.dtype.itemsize + b2.size * b2.dtype.itemsize
        + batch_p * output * x.dtype.itemsize)
    cost = pl.CostEstimate(flops=int(flops),
                           transcendentals=int(batch_p * output),
                           bytes_accessed=int(bytes_accessed))

    out = pl.pallas_call(
        _decoder_kernel,
        out_shape=jax.ShapeDtypeStruct((batch_p, output), x.dtype),
        grid=(num_tiles,),
        in_specs=[
            # batch-tiled activation, true latent width (double-buffered).
            pl.BlockSpec((tile_b, latent), lambda i: (i, 0)),
            # weights / biases at true shapes: VMEM-resident across grid steps.
            pl.BlockSpec((latent, hidden), lambda i: (0, 0)),
            pl.BlockSpec((1, hidden), lambda i: (0, 0)),
            pl.BlockSpec((hidden, output), lambda i: (0, 0)),
            pl.BlockSpec((1, output), lambda i: (0, 0)),
        ],
        # true-width output: ~8x fewer HBM write bytes, no wrapper slice pass.
        out_specs=pl.BlockSpec((tile_b, output), lambda i: (i, 0)),
        compiler_params=pltpu.CompilerParams(
            dimension_semantics=("parallel",),
            vmem_limit_bytes=32 * 1024 * 1024,
            # let XLA fuse the (rare) batch-pad of x into the custom call.
            allow_input_fusion=[True, False, False, False, False],
        ),
        cost_estimate=cost,
    )(xp, w1, b1, w2, b2)

    # strip batch padding only (no feature padding exists anymore).
    return out if batch_p == batch else out[:batch]


def decoder_forward(x, w1, b1, w2, b2):
    """x: (B, latent_dim) -> sigmoid(relu(x @ w1 + b1) @ w2 + b2), shape (B, output_dim)."""
    return _decoder_forward_impl(x, w1, b1, w2, b2)


def init_decoder_params(key, latent_dim, hidden_dim, output_dim, dtype=jnp.float32):
    """Deterministic init mirroring nn.Linear's U(-1/sqrt(fan_in), 1/sqrt(fan_in)).

    Weights are stored pre-transposed as (in_features, out_features), i.e. the
    kernel computes y = x @ W + b (equivalent to PyTorch's x @ W.T + b).
    """
    k1, k2, k3, k4 = jax.random.split(key, 4)
    lim1 = 1.0 / jnp.sqrt(latent_dim)
    lim2 = 1.0 / jnp.sqrt(hidden_dim)
    w1 = jax.random.uniform(k1, (latent_dim, hidden_dim), dtype, -lim1, lim1)
    b1 = jax.random.uniform(k2, (1, hidden_dim), dtype, -lim1, lim1)
    w2 = jax.random.uniform(k3, (hidden_dim, output_dim), dtype, -lim2, lim2)
    b2 = jax.random.uniform(k4, (1, output_dim), dtype, -lim2, lim2)
    return w1, b1, w2, b2


def decoder_reference(x, w1, b1, w2, b2):
    h = jnp.maximum(x @ w1 + b1.reshape(1, -1), 0.0)
    return jax.nn.sigmoid(h @ w2 + b2.reshape(1, -1))


if __name__ == "__main__":
    key = jax.random.PRNGKey(0)
    latent_dim, hidden_dim, output_dim = 8, 32, 16
    k_x, k_p, k_x2, k_x3 = jax.random.split(key, 4)
    w1, b1, w2, b2 = init_decoder_params(k_p, latent_dim, hidden_dim, output_dim)

    # Small module-default batch (single grid step, no padding).
    x = jax.random.normal(k_x, (8, latent_dim), dtype=jnp.float32)
    out = decoder_forward(x, w1, b1, w2, b2)
    jax.block_until_ready(out)
    ref = decoder_reference(x, w1, b1, w2, b2)
    assert out.shape == (8, output_dim)
    assert jnp.allclose(out, ref, atol=1e-5, rtol=1e-5)

    # Non-multiple-of-8 batch: exercises the batch-pad + slice path.
    x2 = jax.random.normal(k_x2, (300, latent_dim), dtype=jnp.float32)
    out2 = decoder_forward(x2, w1, b1, w2, b2)
    jax.block_until_ready(out2)
    ref2 = decoder_reference(x2, w1, b1, w2, b2)
    assert out2.shape == (300, output_dim)
    assert jnp.allclose(out2, ref2, atol=1e-5, rtol=1e-5)

    # Larger batch exercising the multi-tile grid + balanced tile selection
    # (still only ~130 KiB of input data).
    x3 = jax.random.normal(k_x3, (4100, latent_dim), dtype=jnp.float32)
    out3 = decoder_forward(x3, w1, b1, w2, b2)
    jax.block_until_ready(out3)
    ref3 = decoder_reference(x3, w1, b1, w2, b2)
    assert out3.shape == (4100, output_dim)
    assert jnp.allclose(out3, ref3, atol=1e-5, rtol=1e-5)

    print("KERNEL_OK")
</pallas_src>

<mosaic_0001>
module attributes {stable_mosaic.version = 11 : i64} {
  func.func @_decoder_kernel(%arg0: i32, %arg1: memref<8x8xf32, #tpu.memory_space<vmem>>, %arg2: memref<8x32xf32, #tpu.memory_space<vmem>>, %arg3: memref<1x32xf32, #tpu.memory_space<vmem>>, %arg4: memref<32x16xf32, #tpu.memory_space<vmem>>, %arg5: memref<1x16xf32, #tpu.memory_space<vmem>>, %arg6: memref<8x16xf32, #tpu.memory_space<vmem>>) attributes {dimension_semantics = [#tpu.dimension_semantics<parallel>], iteration_bounds = array<i64: 1>, scalar_prefetch = 0 : i64, scratch_operands = 0 : i64, tpu.core_type = #tpu.core_type<tc>, window_params = [{transform_indices = @transform_0, window_bounds = array<i64: 8, 8>}, {pipeline_mode = #tpu.pipeline_mode<synchronous>, transform_indices = @transform_1, window_bounds = array<i64: 8, 32>}, {pipeline_mode = #tpu.pipeline_mode<synchronous>, transform_indices = @transform_2, window_bounds = array<i64: 1, 32>}, {pipeline_mode = #tpu.pipeline_mode<synchronous>, transform_indices = @transform_3, window_bounds = array<i64: 32, 16>}, {pipeline_mode = #tpu.pipeline_mode<synchronous>, transform_indices = @transform_4, window_bounds = array<i64: 1, 16>}, {transform_indices = @transform_5, window_bounds = array<i64: 8, 16>}]} {
    %c0 = arith.constant 0 : index
    %c0_0 = arith.constant 0 : index
    %0 = vector.load %arg1[%c0, %c0_0] : memref<8x8xf32, #tpu.memory_space<vmem>>, vector<8x8xf32>
    %c0_1 = arith.constant 0 : index
    %c0_2 = arith.constant 0 : index
    %1 = vector.load %arg2[%c0_1, %c0_2] : memref<8x32xf32, #tpu.memory_space<vmem>>, vector<8x32xf32>
    %cst = arith.constant dense<0.000000e+00> : vector<8x32xf32>
    %2 = tpu.matmul %0, %1, %cst {dimension_numbers = #tpu.dot_dimension_numbers<[1], [0], [0], [1], [0, 0, 1, 1], [], []>} : vector<8x8xf32>, vector<8x32xf32>, vector<8x32xf32> -> vector<8x32xf32>
    %c0_3 = arith.constant 0 : index
    %c0_4 = arith.constant 0 : index
    %3 = vector.load %arg3[%c0_3, %c0_4] : memref<1x32xf32, #tpu.memory_space<vmem>>, vector<1x32xf32>
    %4 = vector.broadcast %3 : vector<1x32xf32> to vector<8x32xf32>
    %5 = arith.addf %2, %4 : vector<8x32xf32>
    %cst_5 = arith.constant 0.000000e+00 : f32
    %6 = vector.broadcast %cst_5 : f32 to vector<8x32xf32>
    %7 = arith.maximumf %5, %6 : vector<8x32xf32>
    %c0_6 = arith.constant 0 : index
    %c0_7 = arith.constant 0 : index
    %8 = vector.load %arg4[%c0_6, %c0_7] : memref<32x16xf32, #tpu.memory_space<vmem>>, vector<32x16xf32>
    %cst_8 = arith.constant dense<0.000000e+00> : vector<8x16xf32>
    %9 = tpu.matmul %7, %8, %cst_8 {dimension_numbers = #tpu.dot_dimension_numbers<[1], [0], [0], [1], [0, 0, 1, 1], [], []>} : vector<8x32xf32>, vector<32x16xf32>, vector<8x16xf32> -> vector<8x16xf32>
    %c0_9 = arith.constant 0 : index
    %c0_10 = arith.constant 0 : index
    %10 = vector.load %arg5[%c0_9, %c0_10] : memref<1x16xf32, #tpu.memory_space<vmem>>, vector<1x16xf32>
    %11 = vector.broadcast %10 : vector<1x16xf32> to vector<8x16xf32>
    %12 = arith.addf %9, %11 : vector<8x16xf32>
    %13 = arith.negf %12 : vector<8x16xf32>
    %14 = math.exp %13 : vector<8x16xf32>
    %cst_11 = arith.constant 1.000000e+00 : f32
    %15 = vector.broadcast %cst_11 : f32 to vector<8x16xf32>
    %16 = arith.addf %15, %14 : vector<8x16xf32>
    %17 = arith.divf %15, %16 : vector<8x16xf32>
    %c0_12 = arith.constant 0 : index
    %c0_13 = arith.constant 0 : index
    %18 = vector.load %arg6[%c0_12, %c0_13] : memref<8x16xf32, #tpu.memory_space<vmem>>, vector<8x16xf32>
    tpu.vector_store %arg6[%c0_12, %c0_13], %17 {strides = array<i32>} : memref<8x16xf32, #tpu.memory_space<vmem>>, vector<8x16xf32>,
    return
  }
  func.func @transform_0(%arg0: i32) -> (i32, i32) {
    %c0_i32 = arith.constant 0 : i32
    %c0_i32_0 = arith.constant 0 : i32
    return %arg0, %c0_i32 : i32, i32
  }
  func.func @transform_1(%arg0: i32) -> (i32, i32) {
    %c0_i32 = arith.constant 0 : i32
    %c0_i32_0 = arith.constant 0 : i32
    %c0_i32_1 = arith.constant 0 : i32
    return %c0_i32, %c0_i32_0 : i32, i32
  }
  func.func @transform_2(%arg0: i32) -> (i32, i32) {
    %c0_i32 = arith.constant 0 : i32
    %c0_i32_0 = arith.constant 0 : i32
    %c0_i32_1 = arith.constant 0 : i32
    return %c0_i32, %c0_i32_0 : i32, i32
  }
  func.func @transform_3(%arg0: i32) -> (i32, i32) {
    %c0_i32 = arith.constant 0 : i32
    %c0_i32_0 = arith.constant 0 : i32
    %c0_i32_1 = arith.constant 0 : i32
    return %c0_i32, %c0_i32_0 : i32, i32
  }
  func.func @transform_4(%arg0: i32) -> (i32, i32) {
    %c0_i32 = arith.constant 0 : i32
    %c0_i32_0 = arith.constant 0 : i32
    %c0_i32_1 = arith.constant 0 : i32
    return %c0_i32, %c0_i32_0 : i32, i32
  }
  func.func @transform_5(%arg0: i32) -> (i32, i32) {
    %c0_i32 = arith.constant 0 : i32
    %c0_i32_0 = arith.constant 0 : i32
    return %arg0, %c0_i32 : i32, i32
  }
}

</mosaic_0001>

<llo_original>
// kernel: _decoder_forward_impl.1
$region0: #{_decoder_forward_impl.1}
  #allocation0 [shape = 'u32[]', space=smem, size = 0x4, offset = 0x4, fixed_abs, tag = 'smem constant byte address 0x4 - core index']
  #allocation1 [shape = 'u32[144,128]{1,0:T(1,128)}', space=vmem, size = 0x12000, scoped, tag = 'internal scratch']
  %s0 = inlined_call_operand.vmem [shape: f32[8,8], index: 0, kind: input, shape index: {}]
  %s1 = inlined_call_operand.vmem [shape: f32[8,32], index: 1, kind: input, shape index: {}]
  %s2 = inlined_call_operand.vmem [shape: f32[1,32], index: 2, kind: input, shape index: {}]
  %s3 = inlined_call_operand.vmem [shape: f32[32,16], index: 3, kind: input, shape index: {}]
  %s4 = inlined_call_operand.vmem [shape: f32[1,16], index: 4, kind: input, shape index: {}]
  %s5 = inlined_call_operand.hbm [shape: f32[8,16], index: 5, kind: output, shape index: {}]
  %s6 = sld [smem:[#allocation0]]
  $region30: #{_decoder_forward_impl.1} parent=0
    _
  %s8 = ssub.s32 1, %s6
  %s9 = scalar_select 0, %s8, %s6
  $region1: #{_decoder_forward_impl.1} parent=0
    #allocation2 [shape = 'u8[4096]{0}', space=vmem, size = 0x1000, scoped, tag = 'output window, operand 0, single buffered']
    #allocation3 [shape = 's32[1]{0}', space=sflag, size = 0x4, scoped, tag = 'scoped memory for _decoder_forward_impl.1']
    %10 = vsyncpa [#allocation3], 0
    // Predicated region
    $region2: #{_decoder_forward_impl.1} parent=1 // pred_check
      _
    $region3: #{_decoder_forward_impl.1} parent=1 // pred_check_branch
      %12 = sbr.rel (0) target = $region5
    $region4: #{_decoder_forward_impl.1} parent=1 // pred_region
      _
    $region5: #{_decoder_forward_impl.1} parent=1 // pred_fallthru
      _
    // Predicated region
    $region6: #{_decoder_forward_impl.1} parent=1 // pred_check
      _
    $region7: #{_decoder_forward_impl.1} parent=1 // pred_check_branch
      %14 = sbr.rel (0) target = $region9
    $region8: #{_decoder_forward_impl.1} parent=1 // pred_region
      _
    $region9: #{_decoder_forward_impl.1} parent=1 // pred_fallthru
      _
    // Predicated region
    $region10: #{_decoder_forward_impl.1} parent=1 // pred_check
      _
    $region11: #{_decoder_forward_impl.1} parent=1 // pred_check_branch
      %16 = sbr.rel (0) target = $region13
    $region12: #{_decoder_forward_impl.1} parent=1 // pred_region
      _
    $region13: #{_decoder_forward_impl.1} parent=1 // pred_fallthru
      _
    // Predicated region
    $region14: #{_decoder_forward_impl.1} parent=1 // pred_check
      _
    $region15: #{_decoder_forward_impl.1} parent=1 // pred_check_branch
      %18 = sbr.rel (0) target = $region17
    $region16: #{_decoder_forward_impl.1} parent=1 // pred_region
      _
    $region17: #{_decoder_forward_impl.1} parent=1 // pred_fallthru
      _
    // Predicated region
    $region18: #{_decoder_forward_impl.1} parent=1 // pred_check
      _
    $region19: #{_decoder_forward_impl.1} parent=1 // pred_check_branch
      %20 = sbr.rel (0) target = $region21
    $region20: #{_decoder_forward_impl.1} parent=1 // pred_region
      _
    $region21: #{_decoder_forward_impl.1} parent=1 // pred_fallthru
      _
    %v21 = vld [vmem:[%s0] sm:$0xff]
    %v22 = vld [vmem:[%s1] sm:$0xff]
    %v23 = vld [vmem:[%s2] sm:$0x1]
    %v25 = vlaneseq
    %v26 = vshrl.u32 %v25, 7
    %v27 = vsub.s32 0, %v26
    %v28 = vrot.slane %v23, %v27
    %vm30 = vcmask 64512
    %v32 = vsel %vm30, %v21, 0
    %34 = vmatprep.subr.mxu0 0.0
    %35 = vmatpush1.msra.mxu0 0.0
    %36 = vmatprep.subr.mxu0 0.0
    %37 = vmatpush1.msra.mxu0 0.0
    %38 = vmatprep.subr.mxu0 0.0
    %39 = vmatpush1.msra.mxu0 0.0
    %40 = vmatprep.subr.mxu0 0.0
    %41 = vmatpush1.msra.mxu0 0.0
    %42 = vmatprep.subr.mxu0 0.0
    %43 = vmatpush1.msra.mxu0 0.0
    %44 = vmatprep.subr.mxu0 0.0
    %45 = vmatpush1.msra.mxu0 0.0
    %46 = vmatprep.subr.mxu0 0.0
    %47 = vmatpush1.msra.mxu0 0.0
    %48 = vmatprep.subr.mxu0 0.0
    %49 = vmatpush1.msra.mxu0 0.0
    %50 = vmatprep.subr.mxu0 0.0
    %51 = vmatpush1.msra.mxu0 0.0
    %52 = vmatprep.subr.mxu0 0.0
    %53 = vmatpush1.msra.mxu0 0.0
    %54 = vmatprep.subr.mxu0 0.0
    %55 = vmatpush1.msra.mxu0 0.0
    %56 = vmatprep.subr.mxu0 0.0
    %57 = vmatpush1.msra.mxu0 0.0
    %58 = vmatprep.subr.mxu0 0.0
    %59 = vmatpush1.msra.mxu0 0.0
    %60 = vmatprep.subr.mxu0 0.0
    %61 = vmatpush1.msra.mxu0 0.0
    %62 = vmatprep.subr.mxu0 0.0
    %63 = vmatpush1.msra.mxu0 0.0
    %64 = vmatprep.subr.mxu0 0.0
    %65 = vmatpush1.msra.mxu0 %v22
    %66 = vmatprep.subr.mxu0 0.0
    %67 = vmatpush2.msra.mxu0 0.0
    %68 = vmatprep.subr.mxu0 0.0
    %69 = vmatpush2.msra.mxu0 0.0
    %70 = vmatprep.subr.mxu0 0.0
    %71 = vmatpush2.msra.mxu0 0.0
    %72 = vmatprep.subr.mxu0 0.0
    %73 = vmatpush2.msra.mxu0 0.0
    %74 = vmatprep.subr.mxu0 0.0
    %75 = vmatpush2.msra.mxu0 0.0
    %76 = vmatprep.subr.mxu0 0.0
    %77 = vmatpush2.msra.mxu0 0.0
    %78 = vmatprep.subr.mxu0 0.0
    %79 = vmatpush2.msra.mxu0 0.0
    %80 = vmatprep.subr.mxu0 0.0
    %81 = vmatpush2.msra.mxu0 0.0
    %82 = vmatprep.subr.mxu0 0.0
    %83 = vmatpush2.msra.mxu0 0.0
    %84 = vmatprep.subr.mxu0 0.0
    %85 = vmatpush2.msra.mxu0 0.0
    %86 = vmatprep.subr.mxu0 0.0
    %87 = vmatpush2.msra.mxu0 0.0
    %88 = vmatprep.subr.mxu0 0.0
    %89 = vmatpush2.msra.mxu0 0.0
    %90 = vmatprep.subr.mxu0 0.0
    %91 = vmatpush2.msra.mxu0 0.0
    %92 = vmatprep.subr.mxu0 0.0
    %93 = vmatpush2.msra.mxu0 0.0
    %94 = vmatprep.subr.mxu0 0.0
    %95 = vmatpush2.msra.mxu0 0.0
    %96 = vmatprep.subr.mxu0 0.0
    %97 = vmatpush2.msra.mxu0 0.0
    %98 = vmatprep.mubr.f32.mxu0 0.0
    %99 = vmatmul.mubr.f32.gmra.mxu0 %v32
    %v100 = vpop.f32.mrf.mxu0
    %v101 = vadd.f32 %v28, %v100
    %v102 = vpop.f32.mrf.mxu0
    %103 = vdwg.mxu0
    %v104 = vmax.f32 %v101, 0.0
    %v105 = vld [vmem:[%s3] sm:$0xff]
    %v106 = vld [vmem:[%s3 + $0x8] sm:$0xff]
    %v107 = vld [vmem:[%s3 + $0x10] sm:$0xff]
    %v108 = vld [vmem:[%s3 + $0x18] sm:$0xff]
    %v109 = vld [vmem:[%s4] sm:$0x1]
    %v111 = vlaneseq
    %v112 = vshrl.u32 %v111, 7
    %v113 = vsub.s32 0, %v112
    %v114 = vrot.slane %v109, %v113
    %vm116 = vcmask 261120
    %v118 = vsel %vm116, %v104, 0
    %120 = vmatprep.subr.mxu0 0.0
    %121 = vmatpush1.msra.mxu0 0.0
    %122 = vmatprep.subr.mxu0 0.0
    %123 = vmatpush1.msra.mxu0 0.0
    %124 = vmatprep.subr.mxu0 0.0
    %125 = vmatpush1.msra.mxu0 0.0
    %126 = vmatprep.subr.mxu0 0.0
    %127 = vmatpush1.msra.mxu0 0.0
    %128 = vmatprep.subr.mxu0 0.0
    %129 = vmatpush1.msra.mxu0 0.0
    %130 = vmatprep.subr.mxu0 0.0
    %131 = vmatpush1.msra.mxu0 0.0
    %132 = vmatprep.subr.mxu0 0.0
    %133 = vmatpush1.msra.mxu0 0.0
    %134 = vmatprep.subr.mxu0 0.0
    %135 = vmatpush1.msra.mxu0 0.0
    %136 = vmatprep.subr.mxu0 0.0
    %137 = vmatpush1.msra.mxu0 0.0
    %138 = vmatprep.subr.mxu0 0.0
    %139 = vmatpush1.msra.mxu0 0.0
    %140 = vmatprep.subr.mxu0 0.0
    %141 = vmatpush1.msra.mxu0 0.0
    %142 = vmatprep.subr.mxu0 0.0
    %143 = vmatpush1.msra.mxu0 0.0
    %144 = vmatprep.subr.mxu0 0.0
    %145 = vmatpush1.msra.mxu0 %v108
    %146 = vmatprep.subr.mxu0 0.0
    %147 = vmatpush1.msra.mxu0 %v107
    %148 = vmatprep.subr.mxu0 0.0
    %149 = vmatpush1.msra.mxu0 %v106
    %150 = vmatprep.subr.mxu0 0.0
    %151 = vmatpush1.msra.mxu0 %v105
    %152 = vmatprep.subr.mxu0 0.0
    %153 = vmatpush2.msra.mxu0 0.0
    %154 = vmatprep.subr.mxu0 0.0
    %155 = vmatpush2.msra.mxu0 0.0
    %156 = vmatprep.subr.mxu0 0.0
    %157 = vmatpush2.msra.mxu0 0.0
    %158 = vmatprep.subr.mxu0 0.0
    %159 = vmatpush2.msra.mxu0 0.0
    %160 = vmatprep.subr.mxu0 0.0
    %161 = vmatpush2.msra.mxu0 0.0
    %162 = vmatprep.subr.mxu0 0.0
    %163 = vmatpush2.msra.mxu0 0.0
    %164 = vmatprep.subr.mxu0 0.0
    %165 = vmatpush2.msra.mxu0 0.0
    %166 = vmatprep.subr.mxu0 0.0
    %167 = vmatpush2.msra.mxu0 0.0
    %168 = vmatprep.subr.mxu0 0.0
    %169 = vmatpush2.msra.mxu0 0.0
    %170 = vmatprep.subr.mxu0 0.0
    %171 = vmatpush2.msra.mxu0 0.0
    %172 = vmatprep.subr.mxu0 0.0
    %173 = vmatpush2.msra.mxu0 0.0
    %174 = vmatprep.subr.mxu0 0.0
    %175 = vmatpush2.msra.mxu0 0.0
    %176 = vmatprep.subr.mxu0 0.0
    %177 = vmatpush2.msra.mxu0 0.0
    %178 = vmatprep.subr.mxu0 0.0
    %179 = vmatpush2.msra.mxu0 0.0
    %180 = vmatprep.subr.mxu0 0.0
    %181 = vmatpush2.msra.mxu0 0.0
    %182 = vmatprep.subr.mxu0 0.0
    %183 = vmatpush2.msra.mxu0 0.0
    %184 = vmatprep.mubr.f32.mxu0 0.0
    %185 = vmatmul.mubr.f32.gmra.mxu0 %v118
    %v186 = vpop.f32.mrf.mxu0
    %v187 = vadd.f32 %v114, %v186
    %v188 = vpop.f32.mrf.mxu0
    %189 = vdwg.mxu0
    %v190 = vxor.u32 %v187, 2147483648
    %v191 = vmul.f32 %v190, 1.442695
    %v192 = vpow.pop %v191
    %v193 = vadd.f32 %v192, 1.0
    %v194 = vrcp.pop %v193
    %v195 = vmul.f32 1.0, %v194
    %vm196 = vcmask 130048
    %197 = vst.msk [vmem:[#allocation2] sm:$0xff] %vm196, %v195
    // Predicated region
    $region22: #{_decoder_forward_impl.1} parent=1 // pred_check
      _
    $region23: #{_decoder_forward_impl.1} parent=1 // pred_check_branch
      %199 = sbr.rel (0) target = $region25
    $region24: #{_decoder_forward_impl.1} parent=1 // pred_region
      %s201 = ssub.s32 128, 128
      %202 = vsyncadd [#allocation3], %s201
      %s204 = sshll.u32 [#allocation2], 4
      %s205 = int_to_ptr.vmem [resolvable:$true] %s204
      %207 = dma.vmem_to_hbm [thread:$0]  %s205, 128, %s5, [#allocation3]
    $region25: #{_decoder_forward_impl.1} parent=1 // pred_fallthru
      _
    // Predicated region
    $region26: #{_decoder_forward_impl.1} parent=1 // pred_check
      _
    $region27: #{_decoder_forward_impl.1} parent=1 // pred_check_branch
      %209 = sbr.rel (0) target = $region29
    $region28: #{_decoder_forward_impl.1} parent=1 // pred_region
      %210 = dma.done [#allocation3], 128
    $region29: #{_decoder_forward_impl.1} parent=1 // pred_fallthru
      _
    %211 = vsyncpa [#allocation3], 1

</llo_original>
